<compile_context>
chip_gen: v5e
topology: v5e:2x2
jax: 0.10.0
libtpu: 0.0.40
codegen_flags: <defaults>
</compile_context>

<pallas_src>
import functools

import jax
import jax.numpy as jnp
from jax.experimental import pallas as pl
from jax.experimental.pallas import tpu as pltpu


def _round_up(x, m):
    return ((x + m - 1) // m) * m


def _lstm_kernel(x_ref, w_ih_ref, w_hh_ref, b_ref, fc_w_ref, fc_b_ref,
                 out_ref, gx_ref, h_ref, c_ref, *, unroll):
    """One (batch-tile, time-chunk) grid step of the LSTM recurrence.

    x_ref    : (Tc, bt, D)  bf16  embedded inputs, time-major, this chunk / batch tile
    w_ih_ref : (D, G)       bf16  compact gate-packed input weights  (G = 128 lanes)
    w_hh_ref : (H, G)       bf16  compact gate-packed hidden weights
    b_ref    : (1, G)       f32   fused b_ih + b_hh
    fc_w_ref : (H, 128)     f32   classifier weights, lane-padded (cols [0, C) real)
    fc_b_ref : (1, 128)     f32   classifier bias, lane-padded
    out_ref  : (bt, 128)    f32   lane-dense padded logits (written on the last chunk)
    gx_ref   : (Tc, bt, G)  bf16  scratch: this chunk's precomputed input projections
    h_ref    : (bt, H)      f32   persistent hidden state (across time chunks)
    c_ref    : (bt, H)      f32   persistent cell state   (across time chunks)
    """
    chunk = pl.program_id(1)
    n_chunks = pl.num_programs(1)
    Tc, bt, D = x_ref.shape
    H = h_ref.shape[1]
    G = w_ih_ref.shape[1]

    # Start of this batch tile's time sweep: reset the recurrent state.
    @pl.when(chunk == 0)
    def _():
        h_ref[...] = jnp.zeros_like(h_ref)
        c_ref[...] = jnp.zeros_like(c_ref)

    # Chunk prologue: input projection for all Tc timesteps in ONE MXU matmul,
    # bias fused once, stored bf16 (accumulation is f32 inside the dot).
    x2 = x_ref[...].reshape(Tc * bt, D)
    gx = jnp.dot(x2, w_ih_ref[...], preferred_element_type=jnp.float32) + b_ref[...]
    gx_ref[...] = gx.reshape(Tc, bt, G).astype(gx_ref.dtype)

    w_hh = w_hh_ref[...]
    # Lane mask selecting the 'g' (cell candidate) stripe -> tanh; other stripes -> sigmoid.
    # Hoisted out of the time loop (broadcast_in_dim is not CSE'd by JAX).
    lane = jax.lax.broadcasted_iota(jnp.int32, (bt, G), 1)
    g_mask = (lane >= 2 * H) & (lane < 3 * H)

    def step(t, carry):
        h, c = carry                                                   # (bt, H) f32
        gates = gx_ref[t].astype(jnp.float32) + jnp.dot(
            h.astype(jnp.bfloat16), w_hh, preferred_element_type=jnp.float32)
        # One full-vreg sigmoid + one full-vreg tanh, blended per lane (EUP work, not VALU).
        act = jnp.where(g_mask, jnp.tanh(gates), jax.nn.sigmoid(gates))
        i_g = act[:, 0 * H:1 * H]
        f_g = act[:, 1 * H:2 * H]
        g_g = act[:, 2 * H:3 * H]
        o_g = act[:, 3 * H:4 * H]
        c_new = f_g * c + i_g * g_g
        h_new = o_g * jnp.tanh(c_new)
        return h_new, c_new

    h, c = jax.lax.fori_loop(0, Tc, step, (h_ref[...], c_ref[...]), unroll=unroll)
    h_ref[...] = h
    c_ref[...] = c

    # Epilogue on the final chunk: fused classifier, one lane-dense (bt, 128) store.
    @pl.when(chunk == n_chunks - 1)
    def _():
        out_ref[...] = (
            jnp.dot(h, fc_w_ref[...], preferred_element_type=jnp.float32)
            + fc_b_ref[...])


def pack_lstm_params(w_ih, w_hh, b_ih, b_hh, fc_w, fc_b):
    """One-time weight packing (hoisted out of the per-call path).

    Compact gate packing: gate k of PyTorch order [i, f, g, o] occupies lanes
    [k*H, (k+1)*H) of a single 128-lane group.  Requires 4*H <= 128 (H = 32 here).
    """
    H = w_hh.shape[1]
    D = w_ih.shape[1]
    C = fc_w.shape[0]
    assert 4 * H <= 128, "compact gate packing assumes hidden_size <= 32"
    G = 128

    w_ih_p = jnp.zeros((D, G), jnp.bfloat16).at[:, :4 * H].set(w_ih.T.astype(jnp.bfloat16))
    w_hh_p = jnp.zeros((H, G), jnp.bfloat16).at[:, :4 * H].set(w_hh.T.astype(jnp.bfloat16))
    b_p = jnp.zeros((1, G), jnp.float32).at[0, :4 * H].set((b_ih + b_hh).astype(jnp.float32))
    fc_w_p = jnp.zeros((H, 128), jnp.float32).at[:, :C].set(fc_w.T.astype(jnp.float32))
    fc_b_p = jnp.zeros((1, 128), jnp.float32).at[0, :C].set(fc_b.astype(jnp.float32))
    return w_ih_p, w_hh_p, b_p, fc_w_p, fc_b_p


def lstm_forward(x_ids, emb_table, packed, *, hidden=32, num_classes=4,
                 t_chunk=None, batch_tile=16):
    """Full forward: embedding gather (JAX glue) + single Pallas LSTM+classifier kernel."""
    w_ih_p, w_hh_p, b_p, fc_w_p, fc_b_p = packed
    B, T = x_ids.shape
    D = emb_table.shape[1]
    H = hidden
    G = w_ih_p.shape[1]

    if t_chunk is None:
        t_chunk = T
    assert T % t_chunk == 0, "sequence length must be a multiple of the time chunk"
    n_chunks = T // t_chunk

    Bp = _round_up(max(B, batch_tile), batch_tile)
    n_btiles = Bp // batch_tile

    # Embedding gather straight to time-major (T, Bp, D) bf16 (no extra transpose pass).
    # TODO(synk): the gather itself stays an XLA op; a Pallas DMA-gather is not worth it here.
    x_tbd = emb_table[x_ids.T].astype(jnp.bfloat16)                    # (T, B, D)
    if Bp != B:
        x_tbd = jnp.pad(x_tbd, ((0, 0), (0, Bp - B), (0, 0)))          # (T, Bp, D)

    kernel = functools.partial(_lstm_kernel, unroll=min(t_chunk, 8))

    # VMEM budget sized from the actual slabs (+ double-buffer headroom).
    vmem_bytes = 2 * (t_chunk * batch_tile * D * 2)                    # x chunk (dbl buffered)
    vmem_bytes += t_chunk * batch_tile * G * 2                         # gx scratch (bf16)
    vmem_bytes += (D * G + H * G) * 2 + G * 4                          # packed LSTM weights
    vmem_bytes += (H * 128 + 128) * 4                                  # packed classifier
    vmem_bytes += 2 * batch_tile * 128 * 4                             # logits block
    vmem_bytes += 2 * batch_tile * H * 4                               # h / c state
    vmem_bytes = int(min(max(16 * 1024 * 1024, 2 * vmem_bytes), 64 * 1024 * 1024))

    logits_pad = pl.pallas_call(
        kernel,
        out_shape=jax.ShapeDtypeStruct((Bp, 128), jnp.float32),
        grid=(n_btiles, n_chunks),
        in_specs=[
            pl.BlockSpec((t_chunk, batch_tile, D), lambda b, c: (c, b, 0)),  # x chunk
            pl.BlockSpec((D, G), lambda b, c: (0, 0)),                       # W_ih packed
            pl.BlockSpec((H, G), lambda b, c: (0, 0)),                       # W_hh packed
            pl.BlockSpec((1, G), lambda b, c: (0, 0)),                       # bias
            pl.BlockSpec((H, 128), lambda b, c: (0, 0)),                     # fc_w packed
            pl.BlockSpec((1, 128), lambda b, c: (0, 0)),                     # fc_b packed
        ],
        out_specs=pl.BlockSpec((batch_tile, 128), lambda b, c: (b, 0)),
        scratch_shapes=[
            pltpu.VMEM((t_chunk, batch_tile, G), jnp.bfloat16),  # precomputed gates chunk
            pltpu.VMEM((batch_tile, H), jnp.float32),            # persistent h
            pltpu.VMEM((batch_tile, H), jnp.float32),            # persistent c
        ],
        compiler_params=pltpu.CompilerParams(
            dimension_semantics=("parallel", "arbitrary"),
            vmem_limit_bytes=vmem_bytes),
    )(x_tbd, w_ih_p, w_hh_p, b_p, fc_w_p, fc_b_p)

    return logits_pad[:B, :num_classes]


def lstm_reference(x_ids, emb_table, w_ih, w_hh, b_ih, b_hh, fc_w, fc_b):
    """Pure-JAX f32 reference mirroring PyTorch nn.LSTM(batch_first=True) semantics."""
    x_emb = emb_table[x_ids]                      # (B, T, D)
    B, T, D = x_emb.shape
    H = w_hh.shape[1]

    def step(carry, x_t):
        h, c = carry
        gates = x_t @ w_ih.T + b_ih + h @ w_hh.T + b_hh
        i_g = jax.nn.sigmoid(gates[:, 0:H])
        f_g = jax.nn.sigmoid(gates[:, H:2 * H])
        g_g = jnp.tanh(gates[:, 2 * H:3 * H])
        o_g = jax.nn.sigmoid(gates[:, 3 * H:4 * H])
        c_new = f_g * c + i_g * g_g
        h_new = o_g * jnp.tanh(c_new)
        return (h_new, c_new), None

    h0 = jnp.zeros((B, H), jnp.float32)
    c0 = jnp.zeros((B, H), jnp.float32)
    (h_T, _), _ = jax.lax.scan(step, (h0, c0), jnp.transpose(x_emb, (1, 0, 2)))
    return h_T @ fc_w.T + fc_b


if __name__ == "__main__":
    # Small deterministic config matching the module (hidden_size fixed at 32).
    B, T = 2, 8            # batch, sequence length
    VOCAB, D = 50, 16      # embedding table
    H = 32                 # hidden_size
    C = 4                  # num_classes

    key = jax.random.PRNGKey(0)
    k_emb, k_wih, k_whh, k_bih, k_bhh, k_fcw, k_fcb, k_ids = jax.random.split(key, 8)

    emb_table = jax.random.normal(k_emb, (VOCAB, D), jnp.float32) * 0.5
    w_ih = jax.random.normal(k_wih, (4 * H, D), jnp.float32) * 0.1
    w_hh = jax.random.normal(k_whh, (4 * H, H), jnp.float32) * 0.1
    b_ih = jax.random.normal(k_bih, (4 * H,), jnp.float32) * 0.1
    b_hh = jax.random.normal(k_bhh, (4 * H,), jnp.float32) * 0.1
    fc_w = jax.random.normal(k_fcw, (C, H), jnp.float32) * 0.1
    fc_b = jax.random.normal(k_fcb, (C,), jnp.float32) * 0.1

    x_ids = jax.random.randint(k_ids, (B, T), 0, VOCAB, jnp.int32)

    # Pack weights once (hoisted out of the per-call path).
    packed = pack_lstm_params(w_ih, w_hh, b_ih, b_hh, fc_w, fc_b)

    # t_chunk=4 exercises the multi-chunk persistent-state path (2 grid steps along time).
    out = lstm_forward(x_ids, emb_table, packed, hidden=H, num_classes=C, t_chunk=4)
    out = jax.block_until_ready(out)

    ref = lstm_reference(x_ids, emb_table, w_ih, w_hh, b_ih, b_hh, fc_w, fc_b)
    assert out.shape == (B, C)
    # bf16 matmul inputs / bf16 gates slab (f32 accumulation) -> loosened tolerance.
    assert jnp.allclose(out, ref, rtol=2e-2, atol=2e-2), (
        f"max abs diff {jnp.max(jnp.abs(out - ref))}")

    print("KERNEL_OK")
</pallas_src>

<mosaic_0001>
module attributes {stable_mosaic.version = 11 : i64} {
  func.func @_lstm_kernel(%arg0: i32, %arg1: i32, %arg2: memref<4x16x16xbf16, #tpu.memory_space<vmem>>, %arg3: memref<16x128xbf16, #tpu.memory_space<vmem>>, %arg4: memref<32x128xbf16, #tpu.memory_space<vmem>>, %arg5: memref<1x128xf32, #tpu.memory_space<vmem>>, %arg6: memref<32x128xf32, #tpu.memory_space<vmem>>, %arg7: memref<1x128xf32, #tpu.memory_space<vmem>>, %arg8: memref<16x128xf32, #tpu.memory_space<vmem>>, %arg9: memref<4x16x128xbf16, #tpu.memory_space<vmem>>, %arg10: memref<16x32xf32, #tpu.memory_space<vmem>>, %arg11: memref<16x32xf32, #tpu.memory_space<vmem>>) attributes {dimension_semantics = [#tpu.dimension_semantics<parallel>, #tpu.dimension_semantics<arbitrary>], iteration_bounds = array<i64: 1, 2>, scalar_prefetch = 0 : i64, scratch_operands = 3 : i64, tpu.core_type = #tpu.core_type<tc>, window_params = [{transform_indices = @transform_0, window_bounds = array<i64: 4, 16, 16>}, {pipeline_mode = #tpu.pipeline_mode<synchronous>, transform_indices = @transform_1, window_bounds = array<i64: 16, 128>}, {pipeline_mode = #tpu.pipeline_mode<synchronous>, transform_indices = @transform_2, window_bounds = array<i64: 32, 128>}, {pipeline_mode = #tpu.pipeline_mode<synchronous>, transform_indices = @transform_3, window_bounds = array<i64: 1, 128>}, {pipeline_mode = #tpu.pipeline_mode<synchronous>, transform_indices = @transform_4, window_bounds = array<i64: 32, 128>}, {pipeline_mode = #tpu.pipeline_mode<synchronous>, transform_indices = @transform_5, window_bounds = array<i64: 1, 128>}, {transform_indices = @transform_6, window_bounds = array<i64: 16, 128>}]} {
    %c0_i32 = arith.constant 0 : i32
    %0 = arith.cmpi eq, %arg1, %c0_i32 : i32
    %1 = arith.extui %0 : i1 to i32
    %c0_i32_0 = arith.constant 0 : i32
    %2 = arith.cmpi ne, %1, %c0_i32_0 : i32
    scf.if %2 {
      %cst_39 = arith.constant 0.000000e+00 : f32
      %119 = vector.broadcast %cst_39 : f32 to vector<16x32xf32>
      %c0_40 = arith.constant 0 : index
      %c0_41 = arith.constant 0 : index
      %120 = vector.load %arg10[%c0_40, %c0_41] : memref<16x32xf32, #tpu.memory_space<vmem>>, vector<16x32xf32>
      tpu.vector_store %arg10[%c0_40, %c0_41], %119 {strides = array<i32>} : memref<16x32xf32, #tpu.memory_space<vmem>>, vector<16x32xf32>,
      %cst_42 = arith.constant 0.000000e+00 : f32
      %121 = vector.broadcast %cst_42 : f32 to vector<16x32xf32>
      %c0_43 = arith.constant 0 : index
      %c0_44 = arith.constant 0 : index
      %122 = vector.load %arg11[%c0_43, %c0_44] : memref<16x32xf32, #tpu.memory_space<vmem>>, vector<16x32xf32>
      tpu.vector_store %arg11[%c0_43, %c0_44], %121 {strides = array<i32>} : memref<16x32xf32, #tpu.memory_space<vmem>>, vector<16x32xf32>,
    } else {
    }
    %c0 = arith.constant 0 : index
    %c0_1 = arith.constant 0 : index
    %c0_2 = arith.constant 0 : index
    %3 = vector.load %arg2[%c0, %c0_1, %c0_2] : memref<4x16x16xbf16, #tpu.memory_space<vmem>>, vector<4x16x16xbf16>
    %4 = vector.shape_cast %3 : vector<4x16x16xbf16> to vector<64x16xbf16>
    %c0_3 = arith.constant 0 : index
    %c0_4 = arith.constant 0 : index
    %5 = vector.load %arg3[%c0_3, %c0_4] : memref<16x128xbf16, #tpu.memory_space<vmem>>, vector<16x128xbf16>
    %cst = arith.constant dense<0.000000e+00> : vector<64x128xf32>
    %6 = tpu.matmul %4, %5, %cst {dimension_numbers = #tpu.dot_dimension_numbers<[1], [0], [0], [1], [0, 0, 1, 1], [], []>} : vector<64x16xbf16>, vector<16x128xbf16>, vector<64x128xf32> -> vector<64x128xf32>
    %c0_5 = arith.constant 0 : index
    %c0_6 = arith.constant 0 : index
    %7 = vector.load %arg5[%c0_5, %c0_6] : memref<1x128xf32, #tpu.memory_space<vmem>>, vector<1x128xf32>
    %8 = vector.broadcast %7 : vector<1x128xf32> to vector<64x128xf32>
    %9 = arith.addf %6, %8 : vector<64x128xf32>
    %10 = vector.shape_cast %9 : vector<64x128xf32> to vector<4x16x128xf32>
    %11 = arith.truncf %10 : vector<4x16x128xf32> to vector<4x16x128xbf16>
    %c0_7 = arith.constant 0 : index
    %c0_8 = arith.constant 0 : index
    %c0_9 = arith.constant 0 : index
    %12 = vector.load %arg9[%c0_7, %c0_8, %c0_9] : memref<4x16x128xbf16, #tpu.memory_space<vmem>>, vector<4x16x128xbf16>
    tpu.vector_store %arg9[%c0_7, %c0_8, %c0_9], %11 {strides = array<i32>} : memref<4x16x128xbf16, #tpu.memory_space<vmem>>, vector<4x16x128xbf16>,
    %c0_10 = arith.constant 0 : index
    %c0_11 = arith.constant 0 : index
    %13 = vector.load %arg4[%c0_10, %c0_11] : memref<32x128xbf16, #tpu.memory_space<vmem>>, vector<32x128xbf16>
    %14 = tpu.iota {dimensions = array<i32: 1>} : vector<16x128xi32>
    %c64_i32 = arith.constant 64 : i32
    %15 = vector.broadcast %c64_i32 : i32 to vector<16x128xi32>
    %16 = arith.cmpi sge, %14, %15 : vector<16x128xi32>
    %c96_i32 = arith.constant 96 : i32
    %17 = vector.broadcast %c96_i32 : i32 to vector<16x128xi32>
    %18 = arith.cmpi slt, %14, %17 : vector<16x128xi32>
    %19 = arith.andi %16, %18 : vector<16x128xi1>
    %c0_12 = arith.constant 0 : index
    %c0_13 = arith.constant 0 : index
    %20 = vector.load %arg10[%c0_12, %c0_13] : memref<16x32xf32, #tpu.memory_space<vmem>>, vector<16x32xf32>
    %c0_14 = arith.constant 0 : index
    %c0_15 = arith.constant 0 : index
    %21 = vector.load %arg11[%c0_14, %c0_15] : memref<16x32xf32, #tpu.memory_space<vmem>>, vector<16x32xf32>
    %c0_i32_16 = arith.constant 0 : i32
    %22 = arith.index_cast %c0_i32_16 : i32 to index
    %c0_17 = arith.constant 0 : index
    %c0_18 = arith.constant 0 : index
    %23 = vector.load %arg9[%22, %c0_17, %c0_18] : memref<4x16x128xbf16, #tpu.memory_space<vmem>>, vector<1x16x128xbf16>
    %24 = vector.shape_cast %23 : vector<1x16x128xbf16> to vector<16x128xbf16>
    %25 = arith.extf %24 : vector<16x128xbf16> to vector<16x128xf32>
    %26 = arith.truncf %20 : vector<16x32xf32> to vector<16x32xbf16>
    %cst_19 = arith.constant dense<0.000000e+00> : vector<16x128xf32>
    %27 = tpu.matmul %26, %13, %cst_19 {dimension_numbers = #tpu.dot_dimension_numbers<[1], [0], [0], [1], [0, 0, 1, 1], [], []>} : vector<16x32xbf16>, vector<32x128xbf16>, vector<16x128xf32> -> vector<16x128xf32>
    %28 = arith.addf %25, %27 : vector<16x128xf32>
    %29 = math.tanh %28 : vector<16x128xf32>
    %30 = arith.negf %28 : vector<16x128xf32>
    %31 = math.exp %30 : vector<16x128xf32>
    %cst_20 = arith.constant 1.000000e+00 : f32
    %32 = vector.broadcast %cst_20 : f32 to vector<16x128xf32>
    %33 = arith.addf %32, %31 : vector<16x128xf32>
    %34 = arith.divf %32, %33 : vector<16x128xf32>
    %35 = arith.select %19, %29, %34 : vector<16x128xi1>, vector<16x128xf32>
    %36 = vector.extract_strided_slice %35 {offsets = [0, 0], sizes = [16, 32], strides = [1, 1]} : vector<16x128xf32> to vector<16x32xf32>
    %37 = vector.extract_strided_slice %35 {offsets = [0, 32], sizes = [16, 32], strides = [1, 1]} : vector<16x128xf32> to vector<16x32xf32>
    %38 = vector.extract_strided_slice %35 {offsets = [0, 64], sizes = [16, 32], strides = [1, 1]} : vector<16x128xf32> to vector<16x32xf32>
    %39 = vector.extract_strided_slice %35 {offsets = [0, 96], sizes = [16, 32], strides = [1, 1]} : vector<16x128xf32> to vector<16x32xf32>
    %40 = arith.mulf %37, %21 : vector<16x32xf32>
    %41 = arith.mulf %36, %38 : vector<16x32xf32>
    %42 = arith.addf %40, %41 : vector<16x32xf32>
    %43 = math.tanh %42 : vector<16x32xf32>
    %44 = arith.mulf %39, %43 : vector<16x32xf32>
    %c1_i32 = arith.constant 1 : i32
    %45 = arith.index_cast %c1_i32 : i32 to index
    %c0_21 = arith.constant 0 : index
    %c0_22 = arith.constant 0 : index
    %46 = vector.load %arg9[%45, %c0_21, %c0_22] : memref<4x16x128xbf16, #tpu.memory_space<vmem>>, vector<1x16x128xbf16>
    %47 = vector.shape_cast %46 : vector<1x16x128xbf16> to vector<16x128xbf16>
    %48 = arith.extf %47 : vector<16x128xbf16> to vector<16x128xf32>
    %49 = arith.truncf %44 : vector<16x32xf32> to vector<16x32xbf16>
    %cst_23 = arith.constant dense<0.000000e+00> : vector<16x128xf32>
    %50 = tpu.matmul %49, %13, %cst_23 {dimension_numbers = #tpu.dot_dimension_numbers<[1], [0], [0], [1], [0, 0, 1, 1], [], []>} : vector<16x32xbf16>, vector<32x128xbf16>, vector<16x128xf32> -> vector<16x128xf32>
    %51 = arith.addf %48, %50 : vector<16x128xf32>
    %52 = math.tanh %51 : vector<16x128xf32>
    %53 = arith.negf %51 : vector<16x128xf32>
    %54 = math.exp %53 : vector<16x128xf32>
    %cst_24 = arith.constant 1.000000e+00 : f32
    %55 = vector.broadcast %cst_24 : f32 to vector<16x128xf32>
    %56 = arith.addf %55, %54 : vector<16x128xf32>
    %57 = arith.divf %55, %56 : vector<16x128xf32>
    %58 = arith.select %19, %52, %57 : vector<16x128xi1>, vector<16x128xf32>
    %59 = vector.extract_strided_slice %58 {offsets = [0, 0], sizes = [16, 32], strides = [1, 1]} : vector<16x128xf32> to vector<16x32xf32>
    %60 = vector.extract_strided_slice %58 {offsets = [0, 32], sizes = [16, 32], strides = [1, 1]} : vector<16x128xf32> to vector<16x32xf32>
    %61 = vector.extract_strided_slice %58 {offsets = [0, 64], sizes = [16, 32], strides = [1, 1]} : vector<16x128xf32> to vector<16x32xf32>
    %62 = vector.extract_strided_slice %58 {offsets = [0, 96], sizes = [16, 32], strides = [1, 1]} : vector<16x128xf32> to vector<16x32xf32>
    %63 = arith.mulf %60, %42 : vector<16x32xf32>
    %64 = arith.mulf %59, %61 : vector<16x32xf32>
    %65 = arith.addf %63, %64 : vector<16x32xf32>
    %66 = math.tanh %65 : vector<16x32xf32>
    %67 = arith.mulf %62, %66 : vector<16x32xf32>
    %c2_i32 = arith.constant 2 : i32
    %68 = arith.index_cast %c2_i32 : i32 to index
    %c0_25 = arith.constant 0 : index
    %c0_26 = arith.constant 0 : index
    %69 = vector.load %arg9[%68, %c0_25, %c0_26] : memref<4x16x128xbf16, #tpu.memory_space<vmem>>, vector<1x16x128xbf16>
    %70 = vector.shape_cast %69 : vector<1x16x128xbf16> to vector<16x128xbf16>
    %71 = arith.extf %70 : vector<16x128xbf16> to vector<16x128xf32>
    %72 = arith.truncf %67 : vector<16x32xf32> to vector<16x32xbf16>
    %cst_27 = arith.constant dense<0.000000e+00> : vector<16x128xf32>
    %73 = tpu.matmul %72, %13, %cst_27 {dimension_numbers = #tpu.dot_dimension_numbers<[1], [0], [0], [1], [0, 0, 1, 1], [], []>} : vector<16x32xbf16>, vector<32x128xbf16>, vector<16x128xf32> -> vector<16x128xf32>
    %74 = arith.addf %71, %73 : vector<16x128xf32>
    %75 = math.tanh %74 : vector<16x128xf32>
    %76 = arith.negf %74 : vector<16x128xf32>
    %77 = math.exp %76 : vector<16x128xf32>
    %cst_28 = arith.constant 1.000000e+00 : f32
    %78 = vector.broadcast %cst_28 : f32 to vector<16x128xf32>
    %79 = arith.addf %78, %77 : vector<16x128xf32>
    %80 = arith.divf %78, %79 : vector<16x128xf32>
    %81 = arith.select %19, %75, %80 : vector<16x128xi1>, vector<16x128xf32>
    %82 = vector.extract_strided_slice %81 {offsets = [0, 0], sizes = [16, 32], strides = [1, 1]} : vector<16x128xf32> to vector<16x32xf32>
    %83 = vector.extract_strided_slice %81 {offsets = [0, 32], sizes = [16, 32], strides = [1, 1]} : vector<16x128xf32> to vector<16x32xf32>
    %84 = vector.extract_strided_slice %81 {offsets = [0, 64], sizes = [16, 32], strides = [1, 1]} : vector<16x128xf32> to vector<16x32xf32>
    %85 = vector.extract_strided_slice %81 {offsets = [0, 96], sizes = [16, 32], strides = [1, 1]} : vector<16x128xf32> to vector<16x32xf32>
    %86 = arith.mulf %83, %65 : vector<16x32xf32>
    %87 = arith.mulf %82, %84 : vector<16x32xf32>
    %88 = arith.addf %86, %87 : vector<16x32xf32>
    %89 = math.tanh %88 : vector<16x32xf32>
    %90 = arith.mulf %85, %89 : vector<16x32xf32>
    %c3_i32 = arith.constant 3 : i32
    %91 = arith.index_cast %c3_i32 : i32 to index
    %c0_29 = arith.constant 0 : index
    %c0_30 = arith.constant 0 : index
    %92 = vector.load %arg9[%91, %c0_29, %c0_30] : memref<4x16x128xbf16, #tpu.memory_space<vmem>>, vector<1x16x128xbf16>
    %93 = vector.shape_cast %92 : vector<1x16x128xbf16> to vector<16x128xbf16>
    %94 = arith.extf %93 : vector<16x128xbf16> to vector<16x128xf32>
    %95 = arith.truncf %90 : vector<16x32xf32> to vector<16x32xbf16>
    %cst_31 = arith.constant dense<0.000000e+00> : vector<16x128xf32>
    %96 = tpu.matmul %95, %13, %cst_31 {dimension_numbers = #tpu.dot_dimension_numbers<[1], [0], [0], [1], [0, 0, 1, 1], [], []>} : vector<16x32xbf16>, vector<32x128xbf16>, vector<16x128xf32> -> vector<16x128xf32>
    %97 = arith.addf %94, %96 : vector<16x128xf32>
    %98 = math.tanh %97 : vector<16x128xf32>
    %99 = arith.negf %97 : vector<16x128xf32>
    %100 = math.exp %99 : vector<16x128xf32>
    %cst_32 = arith.constant 1.000000e+00 : f32
    %101 = vector.broadcast %cst_32 : f32 to vector<16x128xf32>
    %102 = arith.addf %101, %100 : vector<16x128xf32>
    %103 = arith.divf %101, %102 : vector<16x128xf32>
    %104 = arith.select %19, %98, %103 : vector<16x128xi1>, vector<16x128xf32>
    %105 = vector.extract_strided_slice %104 {offsets = [0, 0], sizes = [16, 32], strides = [1, 1]} : vector<16x128xf32> to vector<16x32xf32>
    %106 = vector.extract_strided_slice %104 {offsets = [0, 32], sizes = [16, 32], strides = [1, 1]} : vector<16x128xf32> to vector<16x32xf32>
    %107 = vector.extract_strided_slice %104 {offsets = [0, 64], sizes = [16, 32], strides = [1, 1]} : vector<16x128xf32> to vector<16x32xf32>
    %108 = vector.extract_strided_slice %104 {offsets = [0, 96], sizes = [16, 32], strides = [1, 1]} : vector<16x128xf32> to vector<16x32xf32>
    %109 = arith.mulf %106, %88 : vector<16x32xf32>
    %110 = arith.mulf %105, %107 : vector<16x32xf32>
    %111 = arith.addf %109, %110 : vector<16x32xf32>
    %112 = math.tanh %111 : vector<16x32xf32>
    %113 = arith.mulf %108, %112 : vector<16x32xf32>
    %c4_i32 = arith.constant 4 : i32
    %c0_33 = arith.constant 0 : index
    %c0_34 = arith.constant 0 : index
    %114 = vector.load %arg10[%c0_33, %c0_34] : memref<16x32xf32, #tpu.memory_space<vmem>>, vector<16x32xf32>
    tpu.vector_store %arg10[%c0_33, %c0_34], %113 {strides = array<i32>} : memref<16x32xf32, #tpu.memory_space<vmem>>, vector<16x32xf32>,
    %c0_35 = arith.constant 0 : index
    %c0_36 = arith.constant 0 : index
    %115 = vector.load %arg11[%c0_35, %c0_36] : memref<16x32xf32, #tpu.memory_space<vmem>>, vector<16x32xf32>
    tpu.vector_store %arg11[%c0_35, %c0_36], %111 {strides = array<i32>} : memref<16x32xf32, #tpu.memory_space<vmem>>, vector<16x32xf32>,
    %c1_i32_37 = arith.constant 1 : i32
    %116 = arith.cmpi eq, %arg1, %c1_i32_37 : i32
    %117 = arith.extui %116 : i1 to i32
    %c0_i32_38 = arith.constant 0 : i32
    %118 = arith.cmpi ne, %117, %c0_i32_38 : i32
    scf.if %118 {
      %c0_39 = arith.constant 0 : index
      %c0_40 = arith.constant 0 : index
      %119 = vector.load %arg6[%c0_39, %c0_40] : memref<32x128xf32, #tpu.memory_space<vmem>>, vector<32x128xf32>
      %cst_41 = arith.constant dense<0.000000e+00> : vector<16x128xf32>
      %120 = tpu.matmul %113, %119, %cst_41 {dimension_numbers = #tpu.dot_dimension_numbers<[1], [0], [0], [1], [0, 0, 1, 1], [], []>} : vector<16x32xf32>, vector<32x128xf32>, vector<16x128xf32> -> vector<16x128xf32>
      %c0_42 = arith.constant 0 : index
      %c0_43 = arith.constant 0 : index
      %121 = vector.load %arg7[%c0_42, %c0_43] : memref<1x128xf32, #tpu.memory_space<vmem>>, vector<1x128xf32>
      %122 = vector.broadcast %121 : vector<1x128xf32> to vector<16x128xf32>
      %123 = arith.addf %120, %122 : vector<16x128xf32>
      %c0_44 = arith.constant 0 : index
      %c0_45 = arith.constant 0 : index
      %124 = vector.load %arg8[%c0_44, %c0_45] : memref<16x128xf32, #tpu.memory_space<vmem>>, vector<16x128xf32>
      tpu.vector_store %arg8[%c0_44, %c0_45], %123 {strides = array<i32>} : memref<16x128xf32, #tpu.memory_space<vmem>>, vector<16x128xf32>,
    } else {
    }
    return
  }
  func.func @transform_0(%arg0: i32, %arg1: i32) -> (i32, i32, i32) {
    %c0_i32 = arith.constant 0 : i32
    %c0_i32_0 = arith.constant 0 : i32
    return %arg1, %arg0, %c0_i32 : i32, i32, i32
  }
  func.func @transform_1(%arg0: i32, %arg1: i32) -> (i32, i32) {
    %c0_i32 = arith.constant 0 : i32
    %c0_i32_0 = arith.constant 0 : i32
    %c0_i32_1 = arith.constant 0 : i32
    return %c0_i32, %c0_i32_0 : i32, i32
  }
  func.func @transform_2(%arg0: i32, %arg1: i32) -> (i32, i32) {
    %c0_i32 = arith.constant 0 : i32
    %c0_i32_0 = arith.constant 0 : i32
    %c0_i32_1 = arith.constant 0 : i32
    return %c0_i32, %c0_i32_0 : i32, i32
  }
  func.func @transform_3(%arg0: i32, %arg1: i32) -> (i32, i32) {
    %c0_i32 = arith.constant 0 : i32
    %c0_i32_0 = arith.constant 0 : i32
    %c0_i32_1 = arith.constant 0 : i32
    return %c0_i32, %c0_i32_0 : i32, i32
  }
  func.func @transform_4(%arg0: i32, %arg1: i32) -> (i32, i32) {
    %c0_i32 = arith.constant 0 : i32
    %c0_i32_0 = arith.constant 0 : i32
    %c0_i32_1 = arith.constant 0 : i32
    return %c0_i32, %c0_i32_0 : i32, i32
  }
  func.func @transform_5(%arg0: i32, %arg1: i32) -> (i32, i32) {
    %c0_i32 = arith.constant 0 : i32
    %c0_i32_0 = arith.constant 0 : i32
    %c0_i32_1 = arith.constant 0 : i32
    return %c0_i32, %c0_i32_0 : i32, i32
  }
  func.func @transform_6(%arg0: i32, %arg1: i32) -> (i32, i32) {
    %c0_i32 = arith.constant 0 : i32
    %c0_i32_0 = arith.constant 0 : i32
    return %arg0, %c0_i32 : i32, i32
  }
}

</mosaic_0001>

<llo_original>
// kernel: tpu_custom_call.1
$region0: #{tpu_custom_call.1}
  #allocation0 [shape = 'u32[]', space=smem, size = 0x4, offset = 0x4, fixed_abs, tag = 'smem constant byte address 0x4 - core index']
  #allocation1 [shape = 'u32[72,128]{1,0:T(1,128)}', space=vmem, size = 0x9000, scoped, tag = 'internal scratch']
  #allocation2 [shape = 'bf16[4,16,128]{2,1,0:T(8,128)(2,1)}', space=vmem, size = 0x4000, scoped, tag = 'scratch operand']
  #allocation3 [shape = 'f32[16,32]{1,0:T(8,128)}', space=vmem, size = 0x2000, scoped, tag = 'scratch operand']
  #allocation4 [shape = 'f32[16,32]{1,0:T(8,128)}', space=vmem, size = 0x2000, scoped, tag = 'scratch operand']
  %s0 = inlined_call_operand.hbm [shape: bf16[8,16,16], index: 0, kind: input, shape index: {}]
  %s1 = inlined_call_operand.hbm [shape: bf16[16,128], index: 1, kind: input, shape index: {}]
  %s2 = inlined_call_operand.hbm [shape: bf16[32,128], index: 2, kind: input, shape index: {}]
  %s3 = inlined_call_operand.vmem [shape: f32[1,128], index: 3, kind: input, shape index: {}]
  %s4 = inlined_call_operand.hbm [shape: f32[32,128], index: 4, kind: input, shape index: {}]
  %s5 = inlined_call_operand.vmem [shape: f32[1,128], index: 5, kind: input, shape index: {}]
  %s6 = inlined_call_operand.hbm [shape: f32[16,128], index: 6, kind: output, shape index: {}]
  %s7 = sld [smem:[#allocation0]]
  $region81: #{tpu_custom_call.1} parent=0
    _
  %s9 = ssub.s32 1, %s7
  %s10 = scalar_select 0, %s9, %s7
  $region1: #{tpu_custom_call.1} parent=0
    #allocation5 [shape = 'u8[32768]{0}', space=vmem, size = 0x8000, scoped, tag = 'input window, operand 0']
    #allocation6 [shape = 's32[2]{0}', space=sflag, size = 0x8, scoped, tag = 'scoped memory for tpu_custom_call.1']
    #allocation7 [shape = 's32[2]{0}', space=sflag, size = 0x8, scoped, tag = 'scoped memory for tpu_custom_call.1']
    #allocation8 [shape = 'u8[4096]{0}', space=vmem, size = 0x1000, scoped, tag = 'input window, operand 1, single buffered']
    #allocation9 [shape = 's32[1]{0}', space=sflag, size = 0x4, scoped, tag = 'scoped memory for tpu_custom_call.1']
    #allocation10 [shape = 'u8[8192]{0}', space=vmem, size = 0x2000, scoped, tag = 'input window, operand 2, single buffered']
    #allocation11 [shape = 'u8[16384]{0}', space=vmem, size = 0x4000, scoped, tag = 'input window, operand 4, single buffered']
    #allocation12 [shape = 's32[1]{0}', space=sflag, size = 0x4, scoped, tag = 'scoped memory for tpu_custom_call.1']
    #allocation13 [shape = 'u8[8192]{0}', space=vmem, size = 0x2000, scoped, tag = 'output window, operand 0, single buffered']
    %11 = vsyncpa [#allocation6], 0
    %s12 = scalar_lea.sflag [#allocation6], 1
    %13 = vsyncpa %s12, 0
    %14 = vsyncpa [#allocation9], 0
    %15 = vsyncpa [#allocation12], 0
    %16 = vsyncpa [#allocation7], 0
    loop: start=0, step=1, limit=4
    $region2: #{tpu_custom_call.1} parent=1 // loop_pre_header
      _
    $region3: #{tpu_custom_call.1} parent=1 // loop_header
      %s18 = sphi 0, %s22
      %p19 = scmp.ge.s32.totalorder %s18, 4
      %s25 = sphi 0, %s37
      %s26 = sphi 0, %s33
      %s27 = sphi 0, %s25
      %s28 = sphi 0, %s26
      %s29 = sphi 0, %s27
      %s30 = sphi 0, %s28
      %s42 = sphi 0, %s44
      %s45 = sphi 0, %s42
      %s46 = sphi 0, %s45
      %s62 = sphi 0, %s46
      %s66 = sphi 0, %s66
      %s68 = sphi 0, %s66
      %s69 = sphi 0, %s68
      %s83 = sphi 0, %s69
      %s87 = sphi 0, %s87
      %s89 = sphi 0, %s87
      %s90 = sphi 0, %s89
      %s104 = sphi 0, %s90
      %s108 = sphi 0, %s108
      %s110 = sphi 0, %s108
      %s111 = sphi 0, %s110
      %s125 = sphi 0, %s111
      %s129 = sphi 0, %s129
      %s131 = sphi 0, %s129
      %s132 = sphi 0, %s131
      %s146 = sphi 0, %s132
      %s150 = sphi 0, %s150
      %s152 = sphi 0, %s150
      %s153 = sphi 0, %s152
      %s167 = sphi 0, %s153
      %s173 = sphi 0, %s175
      %s176 = sphi 0, %s173
      %s177 = sphi 0, %s176
      %s193 = sphi 0, %s177
    $region4: #{tpu_custom_call.1} parent=1 // loop_header_branch
      %21 = sbr.rel (%p19) target = $region8
    $region5: #{tpu_custom_call.1} parent=1 // loop_body
      %s23 = ssub.s32 %s18, 1
      %s24 = ssub.s32 %s18, 2
      %s31 = sadd.s32 1, %s26
      %p32 = scmp.ge.s32.totalorder %s31, 2
      %s33 = scalar_select %p32, 0, %s31
      %s34 = sadd.s32 1, %s25
      %s35 = scalar_select %p32, %s34, %s25
      %p36 = scmp.ge.s32.totalorder %s35, 1
      %s37 = scalar_select %p36, 0, %s35
      %s38 = ssub.s32 %s26, %s33
      %s39 = ssub.s32 %s25, %s37
      %s40 = sor.u32 %s38, %s39
      %p41 = scmp.eq.s32.totalorder %s40, 0
      %s43 = sadd.s32 %s42, 1
      %s44 = scalar_select %p41, %s42, %s43
      %p47 = pneg %p41
      %p48 = scmp.eq.s32.totalorder %s18, 1
      %p49 = por %p47, %p48
      %p50 = scmp.ne.s32.totalorder %s42, %s45
      %p51 = scmp.eq.s32.totalorder %s18, 0
      %p52 = por %p50, %p51
      %p53 = scmp.ne.s32.totalorder %s42, %s45
      %p54 = scmp.eq.s32.totalorder %s23, 1
      %p55 = por %p53, %p54
      %p56 = scmp.ne.s32.totalorder %s45, %s46
      %p57 = scmp.eq.s32.totalorder %s23, 0
      %p58 = por %p56, %p57
      %p59 = scmp.ne.s32.totalorder %s45, %s46
      %p60 = scmp.eq.s32.totalorder %s24, 1
      %p61 = por %p59, %p60
      %p63 = scmp.ne.s32.totalorder %s46, %s62
      %p64 = scmp.eq.s32.totalorder %s24, 0
      %p65 = por %p63, %p64
      %s67 = sadd.s32 %s66, 1
      %p70 = scmp.eq.s32.totalorder %s18, 1
      %p71 = scmp.ne.s32.totalorder %s66, %s68
      %p72 = scmp.eq.s32.totalorder %s18, 0
      %p73 = por %p71, %p72
      %p74 = scmp.ne.s32.totalorder %s66, %s68
      %p75 = scmp.eq.s32.totalorder %s23, 1
      %p76 = por %p74, %p75
      %p77 = scmp.ne.s32.totalorder %s68, %s69
      %p78 = scmp.eq.s32.totalorder %s23, 0
      %p79 = por %p77, %p78
      %p80 = scmp.ne.s32.totalorder %s68, %s69
      %p81 = scmp.eq.s32.totalorder %s24, 1
      %p82 = por %p80, %p81
      %p84 = scmp.ne.s32.totalorder %s69, %s83
      %p85 = scmp.eq.s32.totalorder %s24, 0
      %p86 = por %p84, %p85
      %s88 = sadd.s32 %s87, 1
      %p91 = scmp.eq.s32.totalorder %s18, 1
      %p92 = scmp.ne.s32.totalorder %s87, %s89
      %p93 = scmp.eq.s32.totalorder %s18, 0
      %p94 = por %p92, %p93
      %p95 = scmp.ne.s32.totalorder %s87, %s89
      %p96 = scmp.eq.s32.totalorder %s23, 1
      %p97 = por %p95, %p96
      %p98 = scmp.ne.s32.totalorder %s89, %s90
      %p99 = scmp.eq.s32.totalorder %s23, 0
      %p100 = por %p98, %p99
      %p101 = scmp.ne.s32.totalorder %s89, %s90
      %p102 = scmp.eq.s32.totalorder %s24, 1
      %p103 = por %p101, %p102
      %p105 = scmp.ne.s32.totalorder %s90, %s104
      %p106 = scmp.eq.s32.totalorder %s24, 0
      %p107 = por %p105, %p106
      %s109 = sadd.s32 %s108, 1
      %p112 = scmp.eq.s32.totalorder %s18, 1
      %p113 = scmp.ne.s32.totalorder %s108, %s110
      %p114 = scmp.eq.s32.totalorder %s18, 0
      %p115 = por %p113, %p114
      %p116 = scmp.ne.s32.totalorder %s108, %s110
      %p117 = scmp.eq.s32.totalorder %s23, 1
      %p118 = por %p116, %p117
      %p119 = scmp.ne.s32.totalorder %s110, %s111
      %p120 = scmp.eq.s32.totalorder %s23, 0
      %p121 = por %p119, %p120
      %p122 = scmp.ne.s32.totalorder %s110, %s111
      %p123 = scmp.eq.s32.totalorder %s24, 1
      %p124 = por %p122, %p123
      %p126 = scmp.ne.s32.totalorder %s111, %s125
      %p127 = scmp.eq.s32.totalorder %s24, 0
      %p128 = por %p126, %p127
      %s130 = sadd.s32 %s129, 1
      %p133 = scmp.eq.s32.totalorder %s18, 1
      %p134 = scmp.ne.s32.totalorder %s129, %s131
      %p135 = scmp.eq.s32.totalorder %s18, 0
      %p136 = por %p134, %p135
      %p137 = scmp.ne.s32.totalorder %s129, %s131
      %p138 = scmp.eq.s32.totalorder %s23, 1
      %p139 = por %p137, %p138
      %p140 = scmp.ne.s32.totalorder %s131, %s132
      %p141 = scmp.eq.s32.totalorder %s23, 0
      %p142 = por %p140, %p141
      %p143 = scmp.ne.s32.totalorder %s131, %s132
      %p144 = scmp.eq.s32.totalorder %s24, 1
      %p145 = por %p143, %p144
      %p147 = scmp.ne.s32.totalorder %s132, %s146
      %p148 = scmp.eq.s32.totalorder %s24, 0
      %p149 = por %p147, %p148
      %s151 = sadd.s32 %s150, 1
      %p154 = scmp.eq.s32.totalorder %s18, 1
      %p155 = scmp.ne.s32.totalorder %s150, %s152
      %p156 = scmp.eq.s32.totalorder %s18, 0
      %p157 = por %p155, %p156
      %p158 = scmp.ne.s32.totalorder %s150, %s152
      %p159 = scmp.eq.s32.totalorder %s23, 1
      %p160 = por %p158, %p159
      %p161 = scmp.ne.s32.totalorder %s152, %s153
      %p162 = scmp.eq.s32.totalorder %s23, 0
      %p163 = por %p161, %p162
      %p164 = scmp.ne.s32.totalorder %s152, %s153
      %p165 = scmp.eq.s32.totalorder %s24, 1
      %p166 = por %p164, %p165
      %p168 = scmp.ne.s32.totalorder %s153, %s167
      %p169 = scmp.eq.s32.totalorder %s24, 0
      %p170 = por %p168, %p169
      %s171 = ssub.s32 %s25, %s37
      %p172 = scmp.eq.s32.totalorder %s171, 0
      %s174 = sadd.s32 %s173, 1
      %s175 = scalar_select %p172, %s173, %s174
      %p178 = pneg %p172
      %p179 = scmp.eq.s32.totalorder %s18, 1
      %p180 = por %p178, %p179
      %p181 = scmp.ne.s32.totalorder %s173, %s176
      %p182 = scmp.eq.s32.totalorder %s18, 0
      %p183 = por %p181, %p182
      %p184 = scmp.ne.s32.totalorder %s173, %s176
      %p185 = scmp.eq.s32.totalorder %s23, 1
      %p186 = por %p184, %p185
      %p187 = scmp.ne.s32.totalorder %s176, %s177
      %p188 = scmp.eq.s32.totalorder %s23, 0
      %p189 = por %p187, %p188
      %p190 = scmp.ne.s32.totalorder %s176, %s177
      %p191 = scmp.eq.s32.totalorder %s24, 1
      %p192 = por %p190, %p191
      %p194 = scmp.ne.s32.totalorder %s177, %s193
      %p195 = scmp.eq.s32.totalorder %s24, 0
      %p196 = por %p194, %p195
      %p197 = scmp.le.s32.totalorder 1, %s18
      %p198 = scmp.lt.s32.totalorder %s18, 3
      %p199 = pnand %p197, %p198
      %p200 = pneg %p199
      // Predicated region
      $region9: #{tpu_custom_call.1} parent=5 // pred_check
        _
      $region10: #{tpu_custom_call.1} parent=5 // pred_check_branch
        %202 = sbr.rel (%p199) target = $region12
      $region11: #{tpu_custom_call.1} parent=5 // pred_region
        %s203 = ssub.s32 %s18, 1
        // Predicated region
        $region13: #{tpu_custom_call.1} parent=11 // pred_check
          %p204 = pneg %p79
        $region14: #{tpu_custom_call.1} parent=11 // pred_check_branch
          %206 = sbr.rel (%p204) target = $region16
        $region15: #{tpu_custom_call.1} parent=11 // pred_region
          %208 = vsyncadd [#allocation9], 0
          %s209 = sshll.u32 %s1, 4
          %s210 = int_to_ptr.hbm [resolvable:$true] %s209
          %s211 = sshll.u32 [#allocation8], 4
          %s212 = int_to_ptr.vmem [resolvable:$true] %s211
          %217 = dma.hbm_to_vmem [thread:$0]  %s210, 128, %s212, [#allocation9], 64, 64, 4
        $region16: #{tpu_custom_call.1} parent=11 // pred_fallthru
          _
        // Predicated region
        $region17: #{tpu_custom_call.1} parent=11 // pred_check
          %p218 = pneg %p100
        $region18: #{tpu_custom_call.1} parent=11 // pred_check_branch
          %220 = sbr.rel (%p218) target = $region20
        $region19: #{tpu_custom_call.1} parent=11 // pred_region
          %222 = vsyncadd [#allocation9], 0
          %s223 = sshll.u32 %s2, 4
          %s224 = int_to_ptr.hbm [resolvable:$true] %s223
          %s225 = sshll.u32 [#allocation10], 4
          %s226 = int_to_ptr.vmem [resolvable:$true] %s225
          %231 = dma.hbm_to_vmem [thread:$0]  %s224, 256, %s226, [#allocation9], 64, 64, 4
        $region20: #{tpu_custom_call.1} parent=11 // pred_fallthru
          _
        // Predicated region
        $region21: #{tpu_custom_call.1} parent=11 // pred_check
          %p232 = pneg %p121
        $region22: #{tpu_custom_call.1} parent=11 // pred_check_branch
          %234 = sbr.rel (%p232) target = $region24
        $region23: #{tpu_custom_call.1} parent=11 // pred_region
          _
        $region24: #{tpu_custom_call.1} parent=11 // pred_fallthru
          _
        // Predicated region
        $region25: #{tpu_custom_call.1} parent=11 // pred_check
          %p235 = pneg %p142
        $region26: #{tpu_custom_call.1} parent=11 // pred_check_branch
          %237 = sbr.rel (%p235) target = $region28
        $region27: #{tpu_custom_call.1} parent=11 // pred_region
          %239 = vsyncadd [#allocation12], 0
          %s240 = sshll.u32 %s4, 4
          %s241 = int_to_ptr.hbm [resolvable:$true] %s240
          %s242 = sshll.u32 [#allocation11], 4
          %s243 = int_to_ptr.vmem [resolvable:$true] %s242
          %248 = dma.hbm_to_vmem [thread:$0]  %s241, 512, %s243, [#allocation12], 128, 128, 8
        $region28: #{tpu_custom_call.1} parent=11 // pred_fallthru
          _
        // Predicated region
        $region29: #{tpu_custom_call.1} parent=11 // pred_check
          %p249 = pneg %p163
        $region30: #{tpu_custom_call.1} parent=11 // pred_check_branch
          %251 = sbr.rel (%p249) target = $region32
        $region31: #{tpu_custom_call.1} parent=11 // pred_region
          _
        $region32: #{tpu_custom_call.1} parent=11 // pred_fallthru
          _
      $region12: #{tpu_custom_call.1} parent=5 // pred_fallthru
        _
      %p252 = scmp.lt.s32.totalorder %s18, 2
      // Predicated region
      $region33: #{tpu_custom_call.1} parent=5 // pred_check
        %p253 = pneg %p252
      $region34: #{tpu_custom_call.1} parent=5 // pred_check_branch
        %255 = sbr.rel (%p253) target = $region36
      $region35: #{tpu_custom_call.1} parent=5 // pred_region
        // Predicated region
        $region37: #{tpu_custom_call.1} parent=35 // pred_check
          %p256 = pneg %p52
        $region38: #{tpu_custom_call.1} parent=35 // pred_check_branch
          %258 = sbr.rel (%p256) target = $region40
        $region39: #{tpu_custom_call.1} parent=35 // pred_region
          %s259 = sand.u32 %s42, 1
          %s260 = scalar_lea.sflag [#allocation6], %s259
          %s261 = sand.u32 %s42, 1
          %s262 = smul.addr %s261, 32
          %s263 = scalar_lea.vmem [#allocation5], %s262
          %s264 = smul.u32 4, %s26
          %s265 = smul.u32 2, %s25
          %267 = vsyncadd %s260, 0
          %s268 = smul.addr %s264, 2
          %s269 = sadd.s32 %s265, %s268
          %s270 = smul.addr %s269, 4
          %s271 = scalar_lea.hbm %s0, %s270
          %s272 = sshll.u32 %s271, 4
          %s273 = int_to_ptr.hbm [resolvable:$true] %s272
          %s274 = sshll.u32 %s263, 4
          %s275 = int_to_ptr.vmem [resolvable:$true] %s274
          %280 = dma.hbm_to_vmem [thread:$0]  %s273, 512, %s275, %s260, 64, 64, 4
        $region40: #{tpu_custom_call.1} parent=35 // pred_fallthru
          _
      $region36: #{tpu_custom_call.1} parent=5 // pred_fallthru
        _
      %p281 = scmp.le.s32.totalorder 1, %s18
      %p282 = scmp.lt.s32.totalorder %s18, 3
      %p283 = pnand %p281, %p282
      %p284 = pneg %p283
      // Predicated region
      $region41: #{tpu_custom_call.1} parent=5 // pred_check
        _
      $region42: #{tpu_custom_call.1} parent=5 // pred_check_branch
        %286 = sbr.rel (%p283) target = $region44
      $region43: #{tpu_custom_call.1} parent=5 // pred_region
        %s287 = ssub.s32 %s18, 1
        %s288 = sand.u32 %s45, 1
        %s289 = scalar_lea.sflag [#allocation6], %s288
        %s290 = sand.u32 %s45, 1
        %s291 = smul.addr %s290, 32
        %s292 = scalar_lea.vmem [#allocation5], %s291
        // Predicated region
        $region45: #{tpu_custom_call.1} parent=43 // pred_check
          %p293 = pneg %p58
        $region46: #{tpu_custom_call.1} parent=43 // pred_check_branch
          %295 = sbr.rel (%p293) target = $region48
        $region47: #{tpu_custom_call.1} parent=43 // pred_region
          %297 = dma.done %s289, 512
        $region48: #{tpu_custom_call.1} parent=43 // pred_fallthru
          _
        // Predicated region
        $region49: #{tpu_custom_call.1} parent=43 // pred_check
          %p298 = pneg %p79
        $region50: #{tpu_custom_call.1} parent=43 // pred_check_branch
          %300 = sbr.rel (%p298) target = $region52
        $region51: #{tpu_custom_call.1} parent=43 // pred_region
          %302 = dma.done [#allocation9], 128
        $region52: #{tpu_custom_call.1} parent=43 // pred_fallthru
          _
        // Predicated region
        $region53: #{tpu_custom_call.1} parent=43 // pred_check
          %p303 = pneg %p100
        $region54: #{tpu_custom_call.1} parent=43 // pred_check_branch
          %305 = sbr.rel (%p303) target = $region56
        $region55: #{tpu_custom_call.1} parent=43 // pred_region
          %307 = dma.done [#allocation9], 256
        $region56: #{tpu_custom_call.1} parent=43 // pred_fallthru
          _
        // Predicated region
        $region57: #{tpu_custom_call.1} parent=43 // pred_check
          %p308 = pneg %p142
        $region58: #{tpu_custom_call.1} parent=43 // pred_check_branch
          %310 = sbr.rel (%p308) target = $region60
        $region59: #{tpu_custom_call.1} parent=43 // pred_region
          %312 = dma.done [#allocation12], 512
        $region60: #{tpu_custom_call.1} parent=43 // pred_fallthru
          _
        %s313 = sand.u32 %s45, 1
        %s314 = scalar_lea.sflag [#allocation6], %s313
        %s315 = sand.u32 %s45, 1
        %s316 = smul.addr %s315, 32
        %s317 = scalar_lea.vmem [#allocation5], %s316
        %p318 = pneg %p58
        %p319 = pneg %p55
        %p320 = pneg %p79
        %p321 = pneg %p76
        %p322 = pneg %p100
        %p323 = pneg %p97
        %p324 = pneg %p121
        %p325 = pneg %p118
        %p326 = pneg %p142
        %p327 = pneg %p139
        %p328 = pneg %p163
        %p329 = pneg %p160
        %p330 = pneg %p189
        %p331 = pneg %p186
        %s332 = smul.u32 4, %s28
        %s333 = smul.u32 2, %s27
        %s334 = smul.u32 2, %s27
        %p336 = scmp.eq.s32.totalorder %s28, 0
        // Predicated region
        $region61: #{tpu_custom_call.1} parent=43 // pred_check
          %p337 = pneg %p336
        $region62: #{tpu_custom_call.1} parent=43 // pred_check_branch
          %339 = sbr.rel (%p337) target = $region64
        $region63: #{tpu_custom_call.1} parent=43 // pred_region
          %vm340 = vcmask 261120
          %341 = vst.msk [vmem:[#allocation3] sm:$0xff] %vm340, 0.0
          %342 = vst.msk [vmem:[#allocation3 + $0x8] sm:$0xff] %vm340, 0.0
          %343 = vst.msk [vmem:[#allocation4] sm:$0xff] %vm340, 0.0
          %344 = vst.msk [vmem:[#allocation4 + $0x8] sm:$0xff] %vm340, 0.0
        $region64: #{tpu_custom_call.1} parent=43 // pred_fallthru
          _
        %v345 = vld [vmem:[%s292] sm:$0xf]
        %v346 = vld [vmem:[%s292 + $0x4] sm:$0xf]
        %v347 = vld [vmem:[%s292 + $0x8] sm:$0xf]
        %v348 = vld [vmem:[%s292 + $0xc] sm:$0xf]
        %v349 = vld [vmem:[%s292 + $0x10] sm:$0xf]
        %v350 = vld [vmem:[%s292 + $0x14] sm:$0xf]
        %v351 = vld [vmem:[%s292 + $0x18] sm:$0xf]
        %v352 = vld [vmem:[%s292 + $0x1c] sm:$0xf]
        %v353 = vld [vmem:[#allocation8] sm:$0xf]
        %v354 = vld [vmem:[#allocation8 + $0x4] sm:$0xf]
        %v355 = vld [vmem:[%s3] sm:$0x1]
        %v357 = vperm.slane %v355, 0
        %v367 = vunpack.c.l.b16 %v345
        %v368 = vunpack.c.l.b16 %v346
        %v369 = vunpack.c.l.b16 %v347
        %v370 = vunpack.c.l.b16 %v348
        %v371 = vunpack.c.l.b16 %v349
        %v372 = vunpack.c.l.b16 %v350
        %v373 = vunpack.c.l.b16 %v351
        %v374 = vunpack.c.l.b16 %v352
        %v375 = vpack.c.b16 %v368, %v367
        %v376 = vpack.c.b16 %v370, %v369
        %v377 = vpack.c.b16 %v372, %v371
        %v378 = vpack.c.b16 %v374, %v373
        %v381 = vunpack.c.l.b16 %v353
        %v382 = vunpack.c.l.b16 %v354
        %v383 = vpack.c.b16 %v382, %v381
        %vm385 = vcmask 130048
        %v387 = vsel %vm385, %v375, 0
        %v390 = vsel %vm385, %v376, 0
        %v393 = vsel %vm385, %v377, 0
        %v396 = vsel %vm385, %v378, 0
        %398 = vmatpush.bf16.msra.mxu0 0
        %399 = vmatpush.bf16.msra.mxu0 0
        %400 = vmatpush.bf16.msra.mxu0 0
        %401 = vmatpush.bf16.msra.mxu0 0
        %402 = vmatpush.bf16.msra.mxu0 0
        %403 = vmatpush.bf16.msra.mxu0 0
        %404 = vmatpush.bf16.msra.mxu0 0
        %405 = vmatpush.bf16.msra.mxu0 %v383
        %406 = vmatmul.bf16.gmra.mxu0 %v387
        %v407 = vpop.f32.mrf.mxu0
        %v408 = vadd.f32 %v357, %v407
        %v409 = vpop.f32.mrf.mxu0
        %v410 = vadd.f32 %v357, %v409
        %411 = vmatmul.bf16.gmra.mxu0 %v390
        %v412 = vpop.f32.mrf.mxu0
        %v413 = vadd.f32 %v357, %v412
        %v414 = vpop.f32.mrf.mxu0
        %v415 = vadd.f32 %v357, %v414
        %416 = vmatmul.bf16.gmra.mxu0 %v393
        %v417 = vpop.f32.mrf.mxu0
        %v418 = vadd.f32 %v357, %v417
        %v419 = vpop.f32.mrf.mxu0
        %v420 = vadd.f32 %v357, %v419
        %421 = vmatmul.bf16.gmra.mxu0 %v396
        %v422 = vpop.f32.mrf.mxu0
        %v423 = vadd.f32 %v357, %v422
        %v424 = vpop.f32.mrf.mxu0
        %v425 = vadd.f32 %v357, %v424
        %426 = vdwg.mxu0
        %v427 = vpack.c.bf16 %v408, %v408
        %v428 = vpack.c.bf16 %v410, %v410
        %v429 = vpack.c.bf16 %v413, %v413
        %v430 = vpack.c.bf16 %v415, %v415
        %v431 = vpack.c.bf16 %v418, %v418
        %v432 = vpack.c.bf16 %v420, %v420
        %v433 = vpack.c.bf16 %v423, %v423
        %v434 = vpack.c.bf16 %v425, %v425
        %435 = vst [vmem:[#allocation2] sm:$0xf] %v427
        %436 = vst [vmem:[#allocation2 + $0x4] sm:$0xf] %v428
        %437 = vst [vmem:[#allocation2 + $0x8] sm:$0xf] %v429
        %438 = vst [vmem:[#allocation2 + $0xc] sm:$0xf] %v430
        %439 = vst [vmem:[#allocation2 + $0x10] sm:$0xf] %v431
        %440 = vst [vmem:[#allocation2 + $0x14] sm:$0xf] %v432
        %441 = vst [vmem:[#allocation2 + $0x18] sm:$0xf] %v433
        %442 = vst [vmem:[#allocation2 + $0x1c] sm:$0xf] %v434
        %v443 = vld [vmem:[#allocation10] sm:$0xf]
        %v444 = vld [vmem:[#allocation10 + $0x4] sm:$0xf]
        %v445 = vld [vmem:[#allocation10 + $0x8] sm:$0xf]
        %v446 = vld [vmem:[#allocation10 + $0xc] sm:$0xf]
        %v447 = vlaneseq
        %v448 = vand.u32 %v447, 127
        %vm449 = vcmp.ge.s32.totalorder %v448, 64
        %vm450 = vcmp.lt.s32.totalorder %v448, 96
        %vm451 = vmand %vm449, %vm450
        %v452 = vld [vmem:[#allocation3] sm:$0xff]
        %v453 = vld [vmem:[#allocation3 + $0x8] sm:$0xff]
        %v454 = vld [vmem:[#allocation4] sm:$0xff]
        %v455 = vld [vmem:[#allocation4 + $0x8] sm:$0xff]
        %v456 = vld [vmem:[#allocation2] sm:$0xf]
        %v457 = vld [vmem:[#allocation2 + $0x4] sm:$0xf]
        %v458 = vunpack.c.l.bf16 %v456
        %v459 = vunpack.c.l.bf16 %v457
        %v460 = vpack.c.bf16 %v453, %v452
        %v465 = vunpack.c.l.b16 %v443
        %v466 = vunpack.c.l.b16 %v444
        %v467 = vunpack.c.l.b16 %v445
        %v468 = vunpack.c.l.b16 %v446
        %v469 = vpack.c.b16 %v466, %v465
        %v470 = vpack.c.b16 %v468, %v467
        %vm473 = vcmask 261120
        %v475 = vsel %vm473, %v460, 0
        %477 = vmatpush.bf16.msra.mxu0 0
        %478 = vmatpush.bf16.msra.mxu0 0
        %479 = vmatpush.bf16.msra.mxu0 0
        %480 = vmatpush.bf16.msra.mxu0 0
        %481 = vmatpush.bf16.msra.mxu0 0
        %482 = vmatpush.bf16.msra.mxu0 0
        %483 = vmatpush.bf16.msra.mxu0 %v470
        %484 = vmatpush.bf16.msra.mxu0 %v469
        %485 = vmatmul.bf16.gmra.mxu0 %v475
        %v486 = vpop.f32.mrf.mxu0
        %v487 = vadd.f32 0.0, %v486
        %v488 = vpop.f32.mrf.mxu0
        %v489 = vadd.f32 0.0, %v488
        %490 = vdwg.mxu0
        %v491 = vadd.f32 %v458, %v487
        %v492 = vadd.f32 %v459, %v489
        %v493 = vtanh.pop %v491
        %v494 = vtanh.pop %v492
        %v495 = vxor.u32 %v491, 2147483648
        %v496 = vxor.u32 %v492, 2147483648
        %v497 = vmul.f32 %v495, 1.442695
        %v498 = vpow.pop %v497
        %v499 = vmul.f32 %v496, 1.442695
        %v500 = vpow.pop %v499
        %v501 = vadd.f32 %v498, 1.0
        %v502 = vadd.f32 %v500, 1.0
        %v503 = vrcp.pop %v501
        %v504 = vmul.f32 %v501, %v503
        %v505 = vsub.f32 1.0, %v504
        %v506 = vmul.f32 %v503, %v505
        %v507 = vadd.f32 %v503, %v506
        %vm508 = vweird.f32 %v501
        %vm509 = vweird.f32 %v503
        %vm510 = vmor %vm508, %vm509
        %v511 = vsel %vm510, %v503, %v507
        %v512 = vand.u32 2147483647, %v501
        %vm513 = vcmp.eq.f32.partialorder %v512, 8.507059e+37
        %v514 = vand.u32 %v501, 2147483648
        %v515 = vor.u32 1.1754944e-38, %v514
        %v516 = vsel %vm513, %v515, %v511
        %v517 = vmul.f32 1.0, %v516
        %v518 = vrcp.pop %v502
        %v519 = vmul.f32 %v502, %v518
        %v520 = vsub.f32 1.0, %v519
        %v521 = vmul.f32 %v518, %v520
        %v522 = vadd.f32 %v518, %v521
        %vm523 = vweird.f32 %v502
        %vm524 = vweird.f32 %v518
        %vm525 = vmor %vm523, %vm524
        %v526 = vsel %vm525, %v518, %v522
        %v527 = vand.u32 2147483647, %v502
        %vm528 = vcmp.eq.f32.partialorder %v527, 8.507059e+37
        %v529 = vand.u32 %v502, 2147483648
        %v530 = vor.u32 1.1754944e-38, %v529
        %v531 = vsel %vm528, %v530, %v526
        %v532 = vmul.f32 1.0, %v531
        %v533 = vsel %vm451, %v493, %v517
        %v534 = vsel %vm451, %v494, %v532
        %537 = vrot.lane.b32.xlu0 %v454, 32
        %v538 = vpop.permute.xlu0 %537
        %539 = vrot.lane.b32.xlu0 %v455, 32
        %v540 = vpop.permute.xlu0 %539
        %v543 = vmul.f32 %v533, %v538
        %v544 = vmul.f32 %v534, %v540
        %547 = vrot.lane.b32.xlu0 %v533, 64
        %v548 = vpop.permute.xlu0 %547
        %549 = vrot.lane.b32.xlu0 %v534, 64
        %v550 = vpop.permute.xlu0 %549
        %v553 = vmul.f32 %v533, %v548
        %v554 = vmul.f32 %v534, %v550
        %557 = vrot.lane.b32.xlu0 %v553, 32
        %v558 = vpop.permute.xlu0 %557
        %559 = vrot.lane.b32.xlu0 %v554, 32
        %v560 = vpop.permute.xlu0 %559
        %v563 = vadd.f32 %v543, %v558
        %v564 = vadd.f32 %v544, %v560
        %v565 = vtanh.pop %v563
        %v566 = vtanh.pop %v564
        %569 = vrot.lane.b32.xlu0 %v565, 64
        %v570 = vpop.permute.xlu0 %569
        %571 = vrot.lane.b32.xlu0 %v566, 64
        %v572 = vpop.permute.xlu0 %571
        %v575 = vmul.f32 %v533, %v570
        %v576 = vmul.f32 %v534, %v572
        %s577 = scalar_lea.vmem [#allocation2], 8
        %v578 = vld [vmem:[%s577] sm:$0xf]
        %v579 = vld [vmem:[%s577 + $0x4] sm:$0xf]
        %v580 = vunpack.c.l.bf16 %v578
        %v581 = vunpack.c.l.bf16 %v579
        %v582 = vpack.c.bf16 %v576, %v575
        %584 = vrot.lane.b32.xlu0 %v582, 32
        %v585 = vpop.permute.xlu0 %584
        %v587 = vsel %vm473, %v585, 0
        %589 = vmatpush.bf16.msra.mxu0 0
        %590 = vmatpush.bf16.msra.mxu0 0
        %591 = vmatpush.bf16.msra.mxu0 0
        %592 = vmatpush.bf16.msra.mxu0 0
        %593 = vmatpush.bf16.msra.mxu0 0
        %594 = vmatpush.bf16.msra.mxu0 0
        %595 = vmatpush.bf16.msra.mxu0 %v470
        %596 = vmatpush.bf16.msra.mxu0 %v469
        %597 = vmatmul.bf16.gmra.mxu0 %v587
        %v598 = vpop.f32.mrf.mxu0
        %v599 = vadd.f32 0.0, %v598
        %v600 = vpop.f32.mrf.mxu0
        %v601 = vadd.f32 0.0, %v600
        %602 = vdwg.mxu0
        %v603 = vadd.f32 %v580, %v599
        %v604 = vadd.f32 %v581, %v601
        %v605 = vtanh.pop %v603
        %v606 = vtanh.pop %v604
        %v607 = vxor.u32 %v603, 2147483648
        %v608 = vxor.u32 %v604, 2147483648
        %v609 = vmul.f32 %v607, 1.442695
        %v610 = vpow.pop %v609
        %v611 = vmul.f32 %v608, 1.442695
        %v612 = vpow.pop %v611
        %v613 = vadd.f32 %v610, 1.0
        %v614 = vadd.f32 %v612, 1.0
        %v615 = vrcp.pop %v613
        %v616 = vmul.f32 %v613, %v615
        %v617 = vsub.f32 1.0, %v616
        %v618 = vmul.f32 %v615, %v617
        %v619 = vadd.f32 %v615, %v618
        %vm620 = vweird.f32 %v613
        %vm621 = vweird.f32 %v615
        %vm622 = vmor %vm620, %vm621
        %v623 = vsel %vm622, %v615, %v619
        %v624 = vand.u32 2147483647, %v613
        %vm625 = vcmp.eq.f32.partialorder %v624, 8.507059e+37
        %v626 = vand.u32 %v613, 2147483648
        %v627 = vor.u32 1.1754944e-38, %v626
        %v628 = vsel %vm625, %v627, %v623
        %v629 = vmul.f32 1.0, %v628
        %v630 = vrcp.pop %v614
        %v631 = vmul.f32 %v614, %v630
        %v632 = vsub.f32 1.0, %v631
        %v633 = vmul.f32 %v630, %v632
        %v634 = vadd.f32 %v630, %v633
        %vm635 = vweird.f32 %v614
        %vm636 = vweird.f32 %v630
        %vm637 = vmor %vm635, %vm636
        %v638 = vsel %vm637, %v630, %v634
        %v639 = vand.u32 2147483647, %v614
        %vm640 = vcmp.eq.f32.partialorder %v639, 8.507059e+37
        %v641 = vand.u32 %v614, 2147483648
        %v642 = vor.u32 1.1754944e-38, %v641
        %v643 = vsel %vm640, %v642, %v638
        %v644 = vmul.f32 1.0, %v643
        %v645 = vsel %vm451, %v605, %v629
        %v646 = vsel %vm451, %v606, %v644
        %v647 = vmul.f32 %v645, %v563
        %v648 = vmul.f32 %v646, %v564
        %651 = vrot.lane.b32.xlu0 %v645, 64
        %v652 = vpop.permute.xlu0 %651
        %653 = vrot.lane.b32.xlu0 %v646, 64
        %v654 = vpop.permute.xlu0 %653
        %v657 = vmul.f32 %v645, %v652
        %v658 = vmul.f32 %v646, %v654
        %661 = vrot.lane.b32.xlu0 %v657, 32
        %v662 = vpop.permute.xlu0 %661
        %663 = vrot.lane.b32.xlu0 %v658, 32
        %v664 = vpop.permute.xlu0 %663
        %v667 = vadd.f32 %v647, %v662
        %v668 = vadd.f32 %v648, %v664
        %v669 = vtanh.pop %v667
        %v670 = vtanh.pop %v668
        %673 = vrot.lane.b32.xlu0 %v669, 64
        %v674 = vpop.permute.xlu0 %673
        %675 = vrot.lane.b32.xlu0 %v670, 64
        %v676 = vpop.permute.xlu0 %675
        %v679 = vmul.f32 %v645, %v674
        %v680 = vmul.f32 %v646, %v676
        %s681 = scalar_lea.vmem [#allocation2], 16
        %v682 = vld [vmem:[%s681] sm:$0xf]
        %v683 = vld [vmem:[%s681 + $0x4] sm:$0xf]
        %v684 = vunpack.c.l.bf16 %v682
        %v685 = vunpack.c.l.bf16 %v683
        %v686 = vpack.c.bf16 %v680, %v679
        %688 = vrot.lane.b32.xlu0 %v686, 32
        %v689 = vpop.permute.xlu0 %688
        %v691 = vsel %vm473, %v689, 0
        %693 = vmatpush.bf16.msra.mxu0 0
        %694 = vmatpush.bf16.msra.mxu0 0
        %695 = vmatpush.bf16.msra.mxu0 0
        %696 = vmatpush.bf16.msra.mxu0 0
        %697 = vmatpush.bf16.msra.mxu0 0
        %698 = vmatpush.bf16.msra.mxu0 0
        %699 = vmatpush.bf16.msra.mxu0 %v470
        %700 = vmatpush.bf16.msra.mxu0 %v469
        %701 = vmatmul.bf16.gmra.mxu0 %v691
        %v702 = vpop.f32.mrf.mxu0
        %v703 = vadd.f32 0.0, %v702
        %v704 = vpop.f32.mrf.mxu0
        %v705 = vadd.f32 0.0, %v704
        %706 = vdwg.mxu0
        %v707 = vadd.f32 %v684, %v703
        %v708 = vadd.f32 %v685, %v705
        %v709 = vtanh.pop %v707
        %v710 = vtanh.pop %v708
        %v711 = vxor.u32 %v707, 2147483648
        %v712 = vxor.u32 %v708, 2147483648
        %v713 = vmul.f32 %v711, 1.442695
        %v714 = vpow.pop %v713
        %v715 = vmul.f32 %v712, 1.442695
        %v716 = vpow.pop %v715
        %v717 = vadd.f32 %v714, 1.0
        %v718 = vadd.f32 %v716, 1.0
        %v719 = vrcp.pop %v717
        %v720 = vmul.f32 %v717, %v719
        %v721 = vsub.f32 1.0, %v720
        %v722 = vmul.f32 %v719, %v721
        %v723 = vadd.f32 %v719, %v722
        %vm724 = vweird.f32 %v717
        %vm725 = vweird.f32 %v719
        %vm726 = vmor %vm724, %vm725
        %v727 = vsel %vm726, %v719, %v723
        %v728 = vand.u32 2147483647, %v717
        %vm729 = vcmp.eq.f32.partialorder %v728, 8.507059e+37
        %v730 = vand.u32 %v717, 2147483648
        %v731 = vor.u32 1.1754944e-38, %v730
        %v732 = vsel %vm729, %v731, %v727
        %v733 = vmul.f32 1.0, %v732
        %v734 = vrcp.pop %v718
        %v735 = vmul.f32 %v718, %v734
        %v736 = vsub.f32 1.0, %v735
        %v737 = vmul.f32 %v734, %v736
        %v738 = vadd.f32 %v734, %v737
        %vm739 = vweird.f32 %v718
        %vm740 = vweird.f32 %v734
        %vm741 = vmor %vm739, %vm740
        %v742 = vsel %vm741, %v734, %v738
        %v743 = vand.u32 2147483647, %v718
        %vm744 = vcmp.eq.f32.partialorder %v743, 8.507059e+37
        %v745 = vand.u32 %v718, 2147483648
        %v746 = vor.u32 1.1754944e-38, %v745
        %v747 = vsel %vm744, %v746, %v742
        %v748 = vmul.f32 1.0, %v747
        %v749 = vsel %vm451, %v709, %v733
        %v750 = vsel %vm451, %v710, %v748
        %v751 = vmul.f32 %v749, %v667
        %v752 = vmul.f32 %v750, %v668
        %755 = vrot.lane.b32.xlu0 %v749, 64
        %v756 = vpop.permute.xlu0 %755
        %757 = vrot.lane.b32.xlu0 %v750, 64
        %v758 = vpop.permute.xlu0 %757
        %v761 = vmul.f32 %v749, %v756
        %v762 = vmul.f32 %v750, %v758
        %765 = vrot.lane.b32.xlu0 %v761, 32
        %v766 = vpop.permute.xlu0 %765
        %767 = vrot.lane.b32.xlu0 %v762, 32
        %v768 = vpop.permute.xlu0 %767
        %v771 = vadd.f32 %v751, %v766
        %v772 = vadd.f32 %v752, %v768
        %v773 = vtanh.pop %v771
        %v774 = vtanh.pop %v772
        %777 = vrot.lane.b32.xlu0 %v773, 64
        %v778 = vpop.permute.xlu0 %777
        %779 = vrot.lane.b32.xlu0 %v774, 64
        %v780 = vpop.permute.xlu0 %779
        %v783 = vmul.f32 %v749, %v778
        %v784 = vmul.f32 %v750, %v780
        %s785 = scalar_lea.vmem [#allocation2], 24
        %v786 = vld [vmem:[%s785] sm:$0xf]
        %v787 = vld [vmem:[%s785 + $0x4] sm:$0xf]
        %v788 = vunpack.c.l.bf16 %v786
        %v789 = vunpack.c.l.bf16 %v787
        %v790 = vpack.c.bf16 %v784, %v783
        %792 = vrot.lane.b32.xlu0 %v790, 32
        %v793 = vpop.permute.xlu0 %792
        %v795 = vsel %vm473, %v793, 0
        %797 = vmatpush.bf16.msra.mxu0 0
        %798 = vmatpush.bf16.msra.mxu0 0
        %799 = vmatpush.bf16.msra.mxu0 0
        %800 = vmatpush.bf16.msra.mxu0 0
        %801 = vmatpush.bf16.msra.mxu0 0
        %802 = vmatpush.bf16.msra.mxu0 0
        %803 = vmatpush.bf16.msra.mxu0 %v470
        %804 = vmatpush.bf16.msra.mxu0 %v469
        %805 = vmatmul.bf16.gmra.mxu0 %v795
        %v806 = vpop.f32.mrf.mxu0
        %v807 = vadd.f32 0.0, %v806
        %v808 = vpop.f32.mrf.mxu0
        %v809 = vadd.f32 0.0, %v808
        %810 = vdwg.mxu0
        %v811 = vadd.f32 %v788, %v807
        %v812 = vadd.f32 %v789, %v809
        %v813 = vtanh.pop %v811
        %v814 = vtanh.pop %v812
        %v815 = vxor.u32 %v811, 2147483648
        %v816 = vxor.u32 %v812, 2147483648
        %v817 = vmul.f32 %v815, 1.442695
        %v818 = vpow.pop %v817
        %v819 = vmul.f32 %v816, 1.442695
        %v820 = vpow.pop %v819
        %v821 = vadd.f32 %v818, 1.0
        %v822 = vadd.f32 %v820, 1.0
        %v823 = vrcp.pop %v821
        %v824 = vmul.f32 %v821, %v823
        %v825 = vsub.f32 1.0, %v824
        %v826 = vmul.f32 %v823, %v825
        %v827 = vadd.f32 %v823, %v826
        %vm828 = vweird.f32 %v821
        %vm829 = vweird.f32 %v823
        %vm830 = vmor %vm828, %vm829
        %v831 = vsel %vm830, %v823, %v827
        %v832 = vand.u32 2147483647, %v821
        %vm833 = vcmp.eq.f32.partialorder %v832, 8.507059e+37
        %v834 = vand.u32 %v821, 2147483648
        %v835 = vor.u32 1.1754944e-38, %v834
        %v836 = vsel %vm833, %v835, %v831
        %v837 = vmul.f32 1.0, %v836
        %v838 = vrcp.pop %v822
        %v839 = vmul.f32 %v822, %v838
        %v840 = vsub.f32 1.0, %v839
        %v841 = vmul.f32 %v838, %v840
        %v842 = vadd.f32 %v838, %v841
        %vm843 = vweird.f32 %v822
        %vm844 = vweird.f32 %v838
        %vm845 = vmor %vm843, %vm844
        %v846 = vsel %vm845, %v838, %v842
        %v847 = vand.u32 2147483647, %v822
        %vm848 = vcmp.eq.f32.partialorder %v847, 8.507059e+37
        %v849 = vand.u32 %v822, 2147483648
        %v850 = vor.u32 1.1754944e-38, %v849
        %v851 = vsel %vm848, %v850, %v846
        %v852 = vmul.f32 1.0, %v851
        %v853 = vsel %vm451, %v813, %v837
        %v854 = vsel %vm451, %v814, %v852
        %v855 = vmul.f32 %v853, %v771
        %v856 = vmul.f32 %v854, %v772
        %859 = vrot.lane.b32.xlu0 %v853, 64
        %v860 = vpop.permute.xlu0 %859
        %861 = vrot.lane.b32.xlu0 %v854, 64
        %v862 = vpop.permute.xlu0 %861
        %v865 = vmul.f32 %v853, %v860
        %v866 = vmul.f32 %v854, %v862
        %869 = vrot.lane.b32.xlu0 %v865, 32
        %v870 = vpop.permute.xlu0 %869
        %871 = vrot.lane.b32.xlu0 %v866, 32
        %v872 = vpop.permute.xlu0 %871
        %v875 = vadd.f32 %v855, %v870
        %v876 = vadd.f32 %v856, %v872
        %v877 = vtanh.pop %v875
        %v878 = vtanh.pop %v876
        %881 = vrot.lane.b32.xlu0 %v877, 64
        %v882 = vpop.permute.xlu0 %881
        %883 = vrot.lane.b32.xlu0 %v878, 64
        %v884 = vpop.permute.xlu0 %883
        %v887 = vmul.f32 %v853, %v882
        %v888 = vmul.f32 %v854, %v884
        %891 = vrot.lane.b32.xlu0 %v887, 32
        %v892 = vpop.permute.xlu0 %891
        %893 = vrot.lane.b32.xlu0 %v888, 32
        %v894 = vpop.permute.xlu0 %893
        %897 = vst.msk [vmem:[#allocation3] sm:$0xff] %vm473, %v892
        %898 = vst.msk [vmem:[#allocation3 + $0x8] sm:$0xff] %vm473, %v894
        %901 = vrot.lane.b32.xlu0 %v875, 96
        %v902 = vpop.permute.xlu0 %901
        %903 = vrot.lane.b32.xlu0 %v876, 96
        %v904 = vpop.permute.xlu0 %903
        %907 = vst.msk [vmem:[#allocation4] sm:$0xff] %vm473, %v902
        %908 = vst.msk [vmem:[#allocation4 + $0x8] sm:$0xff] %vm473, %v904
        %p909 = scmp.eq.s32.totalorder %s28, 1
        // Predicated region
        $region65: #{tpu_custom_call.1} parent=43 // pred_check
          %p910 = pneg %p909
        $region66: #{tpu_custom_call.1} parent=43 // pred_check_branch
          %912 = sbr.rel (%p910) target = $region68
        $region67: #{tpu_custom_call.1} parent=43 // pred_region
          %v913 = vld [vmem:[#allocation11] sm:$0xff]
          %v914 = vld [vmem:[#allocation11 + $0x8] sm:$0xff]
          %v915 = vld [vmem:[#allocation11 + $0x10] sm:$0xff]
          %v916 = vld [vmem:[#allocation11 + $0x18] sm:$0xff]
          %v917 = vld [vmem:[%s5] sm:$0x1]
          %v919 = vperm.slane %v917, 0
          %v921 = vsel %vm473, %v892, 0
          %v923 = vsel %vm473, %v894, 0
          %925 = vmatpush.msra.mxu0 0.0
          %926 = vmatpush.msra.mxu0 0.0
          %927 = vmatpush.msra.mxu0 0.0
          %928 = vmatpush.msra.mxu0 0.0
          %929 = vmatpush.msra.mxu0 0.0
          %930 = vmatpush.msra.mxu0 0.0
          %931 = vmatpush.msra.mxu0 0.0
          %932 = vmatpush.msra.mxu0 0.0
          %933 = vmatpush.msra.mxu0 0.0
          %934 = vmatpush.msra.mxu0 0.0
          %935 = vmatpush.msra.mxu0 0.0
          %936 = vmatpush.msra.mxu0 0.0
          %937 = vmatpush.msra.mxu0 %v916
          %938 = vmatpush.msra.mxu0 %v915
          %939 = vmatpush.msra.mxu0 %v914
          %940 = vmatpush.msra.mxu0 %v913
          %941 = vmatmul.f32.gmra.mxu0 %v921
          %v942 = vpop.f32.mrf.mxu0
          %v943 = vadd.f32 %v919, %v942
          %944 = vmatmul.f32.gmra.mxu0 %v923
          %v945 = vpop.f32.mrf.mxu0
          %v946 = vadd.f32 %v919, %v945
          %947 = vdwg.mxu0
          %948 = vst [vmem:[#allocation13] sm:$0xff] %v943
          %949 = vst [vmem:[#allocation13 + $0x8] sm:$0xff] %v946
        $region68: #{tpu_custom_call.1} parent=43 // pred_fallthru
          _
        // Predicated region
        $region69: #{tpu_custom_call.1} parent=43 // pred_check
          %p950 = pneg %p186
        $region70: #{tpu_custom_call.1} parent=43 // pred_check_branch
          %952 = sbr.rel (%p950) target = $region72
        $region71: #{tpu_custom_call.1} parent=43 // pred_region
          %s953 = smul.u32 2, %s27
          %955 = vsyncadd [#allocation7], 0
          %s956 = smul.addr %s953, 8
          %s957 = scalar_lea.hbm %s6, %s956
          %s958 = sshll.u32 [#allocation13], 4
          %s959 = int_to_ptr.vmem [resolvable:$true] %s958
          %s960 = sshll.u32 %s957, 4
          %s961 = int_to_ptr.hbm [resolvable:$true] %s960
          %966 = dma.vmem_to_hbm [thread:$0]  %s959, 256, %s961, [#allocation7], 128, 128, 8
        $region72: #{tpu_custom_call.1} parent=43 // pred_fallthru
          _
        // Predicated region
        $region73: #{tpu_custom_call.1} parent=43 // pred_check
          %p967 = pneg %p186
        $region74: #{tpu_custom_call.1} parent=43 // pred_check_branch
          %969 = sbr.rel (%p967) target = $region76
        $region75: #{tpu_custom_call.1} parent=43 // pred_region
          %971 = dma.done [#allocation7], 256
        $region76: #{tpu_custom_call.1} parent=43 // pred_fallthru
          _
      $region44: #{tpu_custom_call.1} parent=5 // pred_fallthru
        _
      %p972 = scmp.le.s32.totalorder 2, %s18
      // Predicated region
      $region77: #{tpu_custom_call.1} parent=5 // pred_check
        %p973 = pneg %p972
      $region78: #{tpu_custom_call.1} parent=5 // pred_check_branch
        %975 = sbr.rel (%p973) target = $region80
      $region79: #{tpu_custom_call.1} parent=5 // pred_region
        %s976 = ssub.s32 %s18, 2
      $region80: #{tpu_custom_call.1} parent=5 // pred_fallthru
        _
    $region6: #{tpu_custom_call.1} parent=1 // loop_footer
      %s22 = sadd.s32 1, %s18
    $region7: #{tpu_custom_call.1} parent=1 // loop_footer_branch
      %17 = sbr.rel target = $region3
    $region8: #{tpu_custom_call.1} parent=1 // loop_exit
      _
    %977 = vsyncpa [#allocation6], 1
    %s978 = scalar_lea.sflag [#allocation6], 1
    %979 = vsyncpa %s978, 1
    %980 = vsyncpa [#allocation9], 1
    %981 = vsyncpa [#allocation12], 1
    %982 = vsyncpa [#allocation7], 1
    %s983 = scalar_lea.sflag [#allocation7], 1
    %984 = vsyncpa %s983, 1

</llo_original>
